<compile_context>
chip_gen: v5e
topology: v5e:2x2
jax: 0.10.0
libtpu: 0.0.40
codegen_flags: <defaults>
</compile_context>

<pallas_src>
import functools

import jax
import jax.numpy as jnp
from jax.experimental import pallas as pl
from jax.experimental.pallas import tpu as pltpu


def _round_up(v, m):
    return ((v + m - 1) // m) * m


def _cdiv(a, b):
    return (a + b - 1) // b


def _resblock_kernel(x_ref, ln_w_ref, ln_b_ref, w1_ref, b1_ref, w2_ref, b2_ref,
                     o_ref, xn_ref, *maybe_acc, eps, c_real, use_tanh_gelu):
    # When no scratch accumulator is passed, the (f32) output tile itself is the
    # accumulator: its block index (i, 0) is constant over the n axis, so it
    # stays resident in VMEM across all n steps.
    acc_ref = maybe_acc[0] if maybe_acc else o_ref
    n = pl.program_id(1)

    # --- n == 0: LayerNorm once per row tile; init accumulator with the
    #             residual base (xn) plus the final bias b2. -----------------
    @pl.when(n == 0)
    def _():
        x = x_ref[...].astype(jnp.float32)                    # (tm, C_pad)
        c_pad = x.shape[-1]
        inv_c = 1.0 / float(c_real)
        mean = jnp.sum(x, axis=-1, keepdims=True) * inv_c     # pad lanes are 0
        centered = x - mean
        if c_pad != c_real:                                   # mask pad lanes
            lane = jax.lax.broadcasted_iota(jnp.int32, x.shape, 1)
            centered = jnp.where(lane < c_real, centered, 0.0)
        var = jnp.sum(centered * centered, axis=-1, keepdims=True) * inv_c
        # NOTE: fully-padded (garbage) rows have var == 0 -> rsqrt(eps); this is
        # finite by construction and those rows are sliced away by the wrapper.
        xn = centered * jax.lax.rsqrt(var + eps)
        xn = xn * ln_w_ref[...] + ln_b_ref[...]               # pad lanes -> 0
        xn_ref[...] = xn.astype(xn_ref.dtype)                 # bf16 MXU operand
        acc_ref[...] = (xn + b2_ref[...]).astype(acc_ref.dtype)

    # --- every n: one hidden-channel block of proj ---------------------------
    # h_n = GELU(xn @ W1[:, n-blk] + b1[n-blk]); acc += h_n @ W2[n-blk, :]
    h = jnp.dot(xn_ref[...], w1_ref[...], preferred_element_type=jnp.float32)
    h = (h + b1_ref[...]).astype(w2_ref.dtype)      # bf16 epilogue (packs vregs)
    h = jax.nn.gelu(h, approximate=use_tanh_gelu)   # tanh form -> EUP slot
    acc_ref[...] += jnp.dot(h, w2_ref[...],
                            preferred_element_type=jnp.float32
                            ).astype(acc_ref.dtype)

    # --- last n: when a scratch accumulator was used, write the row tile -----
    if maybe_acc:
        @pl.when(n == pl.num_programs(1) - 1)
        def _():
            o_ref[...] = acc_ref[...].astype(o_ref.dtype)


def _pick_tn(C_p, tn):
    """Largest 128-multiple block that divides C_p (prefer full C_p when small)."""
    if C_p <= 512 and tn >= C_p:
        return C_p
    cand = max(128, (min(tn, C_p) // 128) * 128)
    while cand >= 128:
        if C_p % cand == 0:
            return cand
        cand -= 128
    return 128


def _pick_row_tiles(M, tm):
    """Balanced row tiling with >=2 tiles when possible (v7x megacore)."""
    n_tiles = max(_cdiv(M, tm), 2 if M > 8 else 1)
    tm_eff = _round_up(_cdiv(M, n_tiles), 8)
    n_tiles = _cdiv(M, tm_eff)
    return tm_eff, n_tiles


def simple_res_block(x, ln_w, ln_b, w1, b1, w2, b2, *, eps=1e-5,
                     tm=512, tn=256, matmul_dtype=jnp.bfloat16,
                     use_tanh_gelu=True):
    """SimpleResBlock forward: y = LN(x); return y + W2 @ GELU(W1 @ y + b1) + b2.

    x: (..., C).  ln_w/ln_b/b1/b2: (C,).  w1/w2: (C_in, C_out) (pre-transposed
    PyTorch weights).  Matmuls run in `matmul_dtype` (bf16) on the MXU with
    f32 accumulation.
    """
    orig_shape = x.shape
    C = orig_shape[-1]
    x2 = x.reshape(-1, C)
    M = x2.shape[0]

    # Lane-pad channels to a multiple of 128.
    C_p = _round_up(C, 128)
    tn_eff = _pick_tn(C_p, tn)

    # f32 outputs accumulate directly in the resident output tile.
    use_acc_scratch = jnp.dtype(x.dtype) != jnp.dtype(jnp.float32)

    # Generation-aware VMEM cap (v7x ~64 MiB/TC, v5e/v6e 128 MiB), ~12% headroom.
    try:
        vmem_cap = int(pltpu.get_tpu_info().vmem_capacity_bytes)
    except Exception:
        vmem_cap = 128 << 20
    cap = (vmem_cap * 7) // 8

    xb = jnp.dtype(x.dtype).itemsize
    ob = jnp.dtype(x.dtype).itemsize
    wb = jnp.dtype(matmul_dtype).itemsize

    # Pick the row tile: start from the requested tm, auto-shrink if the VMEM
    # budget (double-buffered streamed tiles + scratch) would exceed the cap.
    tm_cur = max(8, min(tm, _round_up(M, 8)))
    while True:
        tm_eff, n_row_tiles = _pick_row_tiles(M, tm_cur)
        need = (2 * tm_eff * C_p * xb                 # x tiles
                + 2 * tm_eff * C_p * ob               # out tiles
                + 2 * C_p * tn_eff * wb               # w1 column blocks
                + 2 * tn_eff * C_p * wb               # w2 row blocks
                + 2 * (3 * C_p + tn_eff) * 4          # ln_w/ln_b/b2/b1 rows
                + tm_eff * C_p * wb                   # xn (LayerNorm cache)
                + (tm_eff * C_p * 4 if use_acc_scratch else 0))
        vmem_limit = need + need // 4 + (4 << 20)
        if vmem_limit <= cap or tm_eff <= 8:
            break
        tm_cur = max(8, tm_cur // 2)
    vmem_limit = int(min(max(vmem_limit, 32 << 20), cap))
    M_p = tm_eff * n_row_tiles

    f32 = jnp.float32
    x_p = x2 if (M_p == M and C_p == C) else jnp.pad(
        x2, ((0, M_p - M), (0, C_p - C)))
    ln_w_p = jnp.pad(ln_w.astype(f32), (0, C_p - C)).reshape(1, C_p)
    ln_b_p = jnp.pad(ln_b.astype(f32), (0, C_p - C)).reshape(1, C_p)
    b1_p = jnp.pad(b1.astype(f32), (0, C_p - C)).reshape(1, C_p)
    b2_p = jnp.pad(b2.astype(f32), (0, C_p - C)).reshape(1, C_p)
    if C_p == C:
        w1_p = w1.astype(matmul_dtype)
        w2_p = w2.astype(matmul_dtype)
    else:
        w1_p = jnp.pad(w1, ((0, C_p - C), (0, C_p - C))).astype(matmul_dtype)
        w2_p = jnp.pad(w2, ((0, C_p - C), (0, C_p - C))).astype(matmul_dtype)

    grid = (n_row_tiles, C_p // tn_eff)
    kernel = functools.partial(_resblock_kernel, eps=eps, c_real=C,
                               use_tanh_gelu=use_tanh_gelu)

    scratch_shapes = [pltpu.VMEM((tm_eff, C_p), matmul_dtype)]  # cached LN(x)
    if use_acc_scratch:
        scratch_shapes.append(pltpu.VMEM((tm_eff, C_p), jnp.float32))

    out = pl.pallas_call(
        kernel,
        out_shape=jax.ShapeDtypeStruct((M_p, C_p), x.dtype),
        grid_spec=pltpu.PrefetchScalarGridSpec(
            num_scalar_prefetch=0,
            grid=grid,
            in_specs=[
                pl.BlockSpec((tm_eff, C_p), lambda i, n: (i, 0)),   # x tile
                pl.BlockSpec((1, C_p), lambda i, n: (0, 0)),        # ln weight
                pl.BlockSpec((1, C_p), lambda i, n: (0, 0)),        # ln bias
                pl.BlockSpec((C_p, tn_eff), lambda i, n: (0, n)),   # w1 col blk
                pl.BlockSpec((1, tn_eff), lambda i, n: (0, n)),     # b1 block
                pl.BlockSpec((tn_eff, C_p), lambda i, n: (n, 0)),   # w2 row blk
                pl.BlockSpec((1, C_p), lambda i, n: (0, 0)),        # b2
            ],
            out_specs=pl.BlockSpec((tm_eff, C_p), lambda i, n: (i, 0)),
            scratch_shapes=scratch_shapes,
        ),
        compiler_params=pltpu.CompilerParams(
            dimension_semantics=("parallel", "arbitrary"),
            vmem_limit_bytes=vmem_limit,
        ),
    )(x_p, ln_w_p, ln_b_p, w1_p, b1_p, w2_p, b2_p)

    if M_p == M and C_p == C:
        return out.reshape(orig_shape)
    return out[:M, :C].reshape(orig_shape)


def _reference(x, ln_w, ln_b, w1, b1, w2, b2, eps=1e-5,
               matmul_dtype=jnp.bfloat16, use_tanh_gelu=True):
    # Mirrors the kernel's numerics: f32 LayerNorm / residual, bf16 MXU
    # operands with f32 accumulation.
    x32 = x.astype(jnp.float32)
    mean = jnp.mean(x32, axis=-1, keepdims=True)
    var = jnp.mean((x32 - mean) ** 2, axis=-1, keepdims=True)
    xn = (x32 - mean) * jax.lax.rsqrt(var + eps) * ln_w + ln_b
    h = jnp.dot(xn.astype(matmul_dtype), w1.astype(matmul_dtype),
                preferred_element_type=jnp.float32) + b1
    h = jax.nn.gelu(h.astype(matmul_dtype), approximate=use_tanh_gelu)
    y = jnp.dot(h.astype(matmul_dtype), w2.astype(matmul_dtype),
                preferred_element_type=jnp.float32) + b2
    return (xn + y).astype(x.dtype)


def _make_params(key, C):
    k1, k2, k3, k4 = jax.random.split(key, 4)
    ln_w = jnp.ones((C,), jnp.float32)
    ln_b = jnp.zeros((C,), jnp.float32)
    scale = 1.0 / jnp.sqrt(jnp.float32(C))
    w1 = jax.random.normal(k1, (C, C), jnp.float32) * scale   # (in, out)
    b1 = jax.random.normal(k2, (C,), jnp.float32) * 0.01
    w2 = jax.random.normal(k3, (C, C), jnp.float32) * scale   # (in, out)
    b2 = jax.random.normal(k4, (C,), jnp.float32) * 0.01
    return ln_w, ln_b, w1, b1, w2, b2


if __name__ == "__main__":
    key = jax.random.PRNGKey(0)
    kx1, kp1, kx2, kp2, kx3 = jax.random.split(key, 5)

    # Case 1: lane-aligned channels (B=2, S=8, C=256), f32 (accumulate-in-output path).
    B, S, C = 2, 8, 256
    x = jax.random.normal(kx1, (B, S, C), dtype=jnp.float32)
    params = _make_params(kp1, C)
    out = jax.block_until_ready(simple_res_block(x, *params))
    ref = _reference(x, *params)
    assert out.shape == x.shape
    assert jnp.allclose(out, ref, atol=2e-2, rtol=2e-2), "mismatch (C=256 f32)"

    # Case 2: ragged rows + non-128-multiple channels (exercises M/C padding).
    B2, S2, C2 = 2, 7, 160
    x2 = jax.random.normal(kx2, (B2, S2, C2), dtype=jnp.float32)
    params2 = _make_params(kp2, C2)
    out2 = jax.block_until_ready(simple_res_block(x2, *params2))
    ref2 = _reference(x2, *params2)
    assert out2.shape == x2.shape
    assert jnp.allclose(out2, ref2, atol=2e-2, rtol=2e-2), "mismatch (C=160)"

    # Case 3: bf16 I/O + explicit tn=128 (exercises the f32 accumulator scratch
    # and the multi-step channel-block reduction path).
    x3 = jax.random.normal(kx3, (B, S, C), dtype=jnp.bfloat16)
    out3 = jax.block_until_ready(simple_res_block(x3, *params, tn=128))
    ref3 = _reference(x3, *params)
    assert out3.shape == x3.shape
    assert jnp.allclose(out3.astype(jnp.float32), ref3.astype(jnp.float32),
                        atol=1e-1, rtol=1e-1), "mismatch (bf16, tn=128)"

    print("KERNEL_OK")
</pallas_src>

<mosaic_0001>
module attributes {stable_mosaic.version = 11 : i64} {
  func.func @_resblock_kernel(%arg0: i32, %arg1: i32, %arg2: memref<8x256xf32, #tpu.memory_space<vmem>>, %arg3: memref<1x256xf32, #tpu.memory_space<vmem>>, %arg4: memref<1x256xf32, #tpu.memory_space<vmem>>, %arg5: memref<256x256xbf16, #tpu.memory_space<vmem>>, %arg6: memref<1x256xf32, #tpu.memory_space<vmem>>, %arg7: memref<256x256xbf16, #tpu.memory_space<vmem>>, %arg8: memref<1x256xf32, #tpu.memory_space<vmem>>, %arg9: memref<8x256xf32, #tpu.memory_space<vmem>>, %arg10: memref<8x256xbf16, #tpu.memory_space<vmem>>) attributes {dimension_semantics = [#tpu.dimension_semantics<parallel>, #tpu.dimension_semantics<arbitrary>], iteration_bounds = array<i64: 2, 1>, scalar_prefetch = 0 : i64, scratch_operands = 1 : i64, tpu.core_type = #tpu.core_type<tc>, window_params = [{transform_indices = @transform_0, window_bounds = array<i64: 8, 256>}, {pipeline_mode = #tpu.pipeline_mode<synchronous>, transform_indices = @transform_1, window_bounds = array<i64: 1, 256>}, {pipeline_mode = #tpu.pipeline_mode<synchronous>, transform_indices = @transform_2, window_bounds = array<i64: 1, 256>}, {transform_indices = @transform_3, window_bounds = array<i64: 256, 256>}, {transform_indices = @transform_4, window_bounds = array<i64: 1, 256>}, {transform_indices = @transform_5, window_bounds = array<i64: 256, 256>}, {pipeline_mode = #tpu.pipeline_mode<synchronous>, transform_indices = @transform_6, window_bounds = array<i64: 1, 256>}, {transform_indices = @transform_7, window_bounds = array<i64: 8, 256>}]} {
    %c0_i32 = arith.constant 0 : i32
    %0 = arith.cmpi eq, %arg1, %c0_i32 : i32
    %1 = arith.extui %0 : i1 to i32
    %c0_i32_0 = arith.constant 0 : i32
    %2 = arith.cmpi ne, %1, %c0_i32_0 : i32
    scf.if %2 {
      %c0_17 = arith.constant 0 : index
      %c0_18 = arith.constant 0 : index
      %28 = vector.load %arg2[%c0_17, %c0_18] : memref<8x256xf32, #tpu.memory_space<vmem>>, vector<8x256xf32>
      %cst_19 = arith.constant dense<0.000000e+00> : vector<8xf32>
      %29 = vector.multi_reduction <add>, %28, %cst_19 [1] : vector<8x256xf32> to vector<8xf32>
      %30 = vector.shape_cast %29 : vector<8xf32> to vector<8x1xf32>
      %cst_20 = arith.constant 3.906250e-03 : f32
      %31 = vector.broadcast %cst_20 : f32 to vector<8x1xf32>
      %32 = arith.mulf %30, %31 : vector<8x1xf32>
      %33 = vector.broadcast %32 : vector<8x1xf32> to vector<8x256xf32>
      %34 = arith.subf %28, %33 : vector<8x256xf32>
      %35 = arith.mulf %34, %34 : vector<8x256xf32>
      %cst_21 = arith.constant dense<0.000000e+00> : vector<8xf32>
      %36 = vector.multi_reduction <add>, %35, %cst_21 [1] : vector<8x256xf32> to vector<8xf32>
      %37 = vector.shape_cast %36 : vector<8xf32> to vector<8x1xf32>
      %cst_22 = arith.constant 3.906250e-03 : f32
      %38 = vector.broadcast %cst_22 : f32 to vector<8x1xf32>
      %39 = arith.mulf %37, %38 : vector<8x1xf32>
      %cst_23 = arith.constant 9.99999974E-6 : f32
      %40 = vector.broadcast %cst_23 : f32 to vector<8x1xf32>
      %41 = arith.addf %39, %40 : vector<8x1xf32>
      %42 = math.rsqrt %41 : vector<8x1xf32>
      %43 = vector.broadcast %42 : vector<8x1xf32> to vector<8x256xf32>
      %44 = arith.mulf %34, %43 : vector<8x256xf32>
      %c0_24 = arith.constant 0 : index
      %c0_25 = arith.constant 0 : index
      %45 = vector.load %arg3[%c0_24, %c0_25] : memref<1x256xf32, #tpu.memory_space<vmem>>, vector<1x256xf32>
      %46 = vector.broadcast %45 : vector<1x256xf32> to vector<8x256xf32>
      %47 = arith.mulf %44, %46 : vector<8x256xf32>
      %c0_26 = arith.constant 0 : index
      %c0_27 = arith.constant 0 : index
      %48 = vector.load %arg4[%c0_26, %c0_27] : memref<1x256xf32, #tpu.memory_space<vmem>>, vector<1x256xf32>
      %49 = vector.broadcast %48 : vector<1x256xf32> to vector<8x256xf32>
      %50 = arith.addf %47, %49 : vector<8x256xf32>
      %51 = arith.truncf %50 : vector<8x256xf32> to vector<8x256xbf16>
      %c0_28 = arith.constant 0 : index
      %c0_29 = arith.constant 0 : index
      %52 = vector.load %arg10[%c0_28, %c0_29] : memref<8x256xbf16, #tpu.memory_space<vmem>>, vector<8x256xbf16>
      tpu.vector_store %arg10[%c0_28, %c0_29], %51 {strides = array<i32>} : memref<8x256xbf16, #tpu.memory_space<vmem>>, vector<8x256xbf16>,
      %c0_30 = arith.constant 0 : index
      %c0_31 = arith.constant 0 : index
      %53 = vector.load %arg8[%c0_30, %c0_31] : memref<1x256xf32, #tpu.memory_space<vmem>>, vector<1x256xf32>
      %54 = vector.broadcast %53 : vector<1x256xf32> to vector<8x256xf32>
      %55 = arith.addf %50, %54 : vector<8x256xf32>
      %c0_32 = arith.constant 0 : index
      %c0_33 = arith.constant 0 : index
      %56 = vector.load %arg9[%c0_32, %c0_33] : memref<8x256xf32, #tpu.memory_space<vmem>>, vector<8x256xf32>
      tpu.vector_store %arg9[%c0_32, %c0_33], %55 {strides = array<i32>} : memref<8x256xf32, #tpu.memory_space<vmem>>, vector<8x256xf32>,
    } else {
    }
    %c0 = arith.constant 0 : index
    %c0_1 = arith.constant 0 : index
    %3 = vector.load %arg10[%c0, %c0_1] : memref<8x256xbf16, #tpu.memory_space<vmem>>, vector<8x256xbf16>
    %c0_2 = arith.constant 0 : index
    %c0_3 = arith.constant 0 : index
    %4 = vector.load %arg5[%c0_2, %c0_3] : memref<256x256xbf16, #tpu.memory_space<vmem>>, vector<256x256xbf16>
    %cst = arith.constant dense<0.000000e+00> : vector<8x256xf32>
    %5 = tpu.matmul %3, %4, %cst {dimension_numbers = #tpu.dot_dimension_numbers<[1], [0], [0], [1], [0, 0, 1, 1], [], []>} : vector<8x256xbf16>, vector<256x256xbf16>, vector<8x256xf32> -> vector<8x256xf32>
    %c0_4 = arith.constant 0 : index
    %c0_5 = arith.constant 0 : index
    %6 = vector.load %arg6[%c0_4, %c0_5] : memref<1x256xf32, #tpu.memory_space<vmem>>, vector<1x256xf32>
    %7 = vector.broadcast %6 : vector<1x256xf32> to vector<8x256xf32>
    %8 = arith.addf %5, %7 : vector<8x256xf32>
    %9 = arith.truncf %8 : vector<8x256xf32> to vector<8x256xbf16>
    %10 = arith.mulf %9, %9 : vector<8x256xbf16>
    %11 = arith.mulf %9, %10 : vector<8x256xbf16>
    %cst_6 = arith.constant 4.467770e-02 : bf16
    %12 = vector.broadcast %cst_6 : bf16 to vector<8x256xbf16>
    %13 = arith.mulf %12, %11 : vector<8x256xbf16>
    %14 = arith.addf %9, %13 : vector<8x256xbf16>
    %cst_7 = arith.constant 7.968750e-01 : bf16
    %15 = vector.broadcast %cst_7 : bf16 to vector<8x256xbf16>
    %16 = arith.mulf %15, %14 : vector<8x256xbf16>
    %17 = math.tanh %16 : vector<8x256xbf16>
    %cst_8 = arith.constant 1.000000e+00 : bf16
    %18 = vector.broadcast %cst_8 : bf16 to vector<8x256xbf16>
    %19 = arith.addf %18, %17 : vector<8x256xbf16>
    %cst_9 = arith.constant 5.000000e-01 : bf16
    %20 = vector.broadcast %cst_9 : bf16 to vector<8x256xbf16>
    %21 = arith.mulf %20, %19 : vector<8x256xbf16>
    %22 = arith.mulf %9, %21 : vector<8x256xbf16>
    %c0_10 = arith.constant 0 : index
    %c0_11 = arith.constant 0 : index
    %23 = vector.load %arg9[%c0_10, %c0_11] : memref<8x256xf32, #tpu.memory_space<vmem>>, vector<8x256xf32>
    %c0_12 = arith.constant 0 : index
    %c0_13 = arith.constant 0 : index
    %24 = vector.load %arg7[%c0_12, %c0_13] : memref<256x256xbf16, #tpu.memory_space<vmem>>, vector<256x256xbf16>
    %cst_14 = arith.constant dense<0.000000e+00> : vector<8x256xf32>
    %25 = tpu.matmul %22, %24, %cst_14 {dimension_numbers = #tpu.dot_dimension_numbers<[1], [0], [0], [1], [0, 0, 1, 1], [], []>} : vector<8x256xbf16>, vector<256x256xbf16>, vector<8x256xf32> -> vector<8x256xf32>
    %26 = arith.addf %23, %25 : vector<8x256xf32>
    %c0_15 = arith.constant 0 : index
    %c0_16 = arith.constant 0 : index
    %27 = vector.load %arg9[%c0_15, %c0_16] : memref<8x256xf32, #tpu.memory_space<vmem>>, vector<8x256xf32>
    tpu.vector_store %arg9[%c0_15, %c0_16], %26 {strides = array<i32>} : memref<8x256xf32, #tpu.memory_space<vmem>>, vector<8x256xf32>,
    return
  }
  func.func @transform_0(%arg0: i32, %arg1: i32) -> (i32, i32) {
    %c0_i32 = arith.constant 0 : i32
    %c0_i32_0 = arith.constant 0 : i32
    return %arg0, %c0_i32 : i32, i32
  }
  func.func @transform_1(%arg0: i32, %arg1: i32) -> (i32, i32) {
    %c0_i32 = arith.constant 0 : i32
    %c0_i32_0 = arith.constant 0 : i32
    %c0_i32_1 = arith.constant 0 : i32
    return %c0_i32, %c0_i32_0 : i32, i32
  }
  func.func @transform_2(%arg0: i32, %arg1: i32) -> (i32, i32) {
    %c0_i32 = arith.constant 0 : i32
    %c0_i32_0 = arith.constant 0 : i32
    %c0_i32_1 = arith.constant 0 : i32
    return %c0_i32, %c0_i32_0 : i32, i32
  }
  func.func @transform_3(%arg0: i32, %arg1: i32) -> (i32, i32) {
    %c0_i32 = arith.constant 0 : i32
    %c0_i32_0 = arith.constant 0 : i32
    return %c0_i32, %arg1 : i32, i32
  }
  func.func @transform_4(%arg0: i32, %arg1: i32) -> (i32, i32) {
    %c0_i32 = arith.constant 0 : i32
    %c0_i32_0 = arith.constant 0 : i32
    return %c0_i32, %arg1 : i32, i32
  }
  func.func @transform_5(%arg0: i32, %arg1: i32) -> (i32, i32) {
    %c0_i32 = arith.constant 0 : i32
    %c0_i32_0 = arith.constant 0 : i32
    return %arg1, %c0_i32 : i32, i32
  }
  func.func @transform_6(%arg0: i32, %arg1: i32) -> (i32, i32) {
    %c0_i32 = arith.constant 0 : i32
    %c0_i32_0 = arith.constant 0 : i32
    %c0_i32_1 = arith.constant 0 : i32
    return %c0_i32, %c0_i32_0 : i32, i32
  }
  func.func @transform_7(%arg0: i32, %arg1: i32) -> (i32, i32) {
    %c0_i32 = arith.constant 0 : i32
    %c0_i32_0 = arith.constant 0 : i32
    return %arg0, %c0_i32 : i32, i32
  }
}

</mosaic_0001>

<llo_original>
// kernel: tpu_custom_call.1
$region0: #{tpu_custom_call.1}
  #allocation0 [shape = 'u32[]', space=smem, size = 0x4, offset = 0x4, fixed_abs, tag = 'smem constant byte address 0x4 - core index']
  #allocation1 [shape = 'u32[72,128]{1,0:T(1,128)}', space=vmem, size = 0x9000, scoped, tag = 'internal scratch']
  #allocation2 [shape = 'bf16[8,256]{1,0:T(8,128)(2,1)}', space=vmem, size = 0x1000, scoped, tag = 'scratch operand']
  %s0 = inlined_call_operand.hbm [shape: f32[16,256], index: 0, kind: input, shape index: {}]
  %s1 = inlined_call_operand.hbm [shape: f32[1,256], index: 1, kind: input, shape index: {}]
  %s2 = inlined_call_operand.hbm [shape: f32[1,256], index: 2, kind: input, shape index: {}]
  %s3 = inlined_call_operand.hbm [shape: bf16[256,256], index: 3, kind: input, shape index: {}]
  %s4 = inlined_call_operand.vmem [shape: f32[1,256], index: 4, kind: input, shape index: {}]
  %s5 = inlined_call_operand.hbm [shape: bf16[256,256], index: 5, kind: input, shape index: {}]
  %s6 = inlined_call_operand.vmem [shape: f32[1,256], index: 6, kind: input, shape index: {}]
  %s7 = inlined_call_operand.hbm [shape: f32[16,256], index: 7, kind: output, shape index: {}]
  %s8 = sld [smem:[#allocation0]]
  $region85: #{tpu_custom_call.1} parent=0
    _
  %s10 = ssub.s32 1, %s8
  %s11 = scalar_select 0, %s10, %s8
  $region1: #{tpu_custom_call.1} parent=0
    #allocation3 [shape = 'u8[16384]{0}', space=vmem, size = 0x4000, scoped, tag = 'input window, operand 0']
    #allocation4 [shape = 's32[2]{0}', space=sflag, size = 0x8, scoped, tag = 'scoped memory for tpu_custom_call.1']
    #allocation5 [shape = 's32[2]{0}', space=sflag, size = 0x8, scoped, tag = 'scoped memory for tpu_custom_call.1']
    #allocation6 [shape = 'u8[1024]{0}', space=vmem, size = 0x400, scoped, tag = 'input window, operand 1, single buffered']
    #allocation7 [shape = 's32[1]{0}', space=sflag, size = 0x4, scoped, tag = 'scoped memory for tpu_custom_call.1']
    #allocation8 [shape = 'u8[1024]{0}', space=vmem, size = 0x400, scoped, tag = 'input window, operand 2, single buffered']
    #allocation9 [shape = 'u8[131072]{0}', space=vmem, size = 0x20000, scoped, tag = 'input window, operand 3, single buffered']
    #allocation10 [shape = 's32[1]{0}', space=sflag, size = 0x4, scoped, tag = 'scoped memory for tpu_custom_call.1']
    #allocation11 [shape = 'u8[131072]{0}', space=vmem, size = 0x20000, scoped, tag = 'input window, operand 5, single buffered']
    #allocation12 [shape = 'u8[16384]{0}', space=vmem, size = 0x4000, scoped, tag = 'output window, operand 0']
    %12 = vsyncpa [#allocation4], 0
    %s13 = scalar_lea.sflag [#allocation4], 1
    %14 = vsyncpa %s13, 0
    %15 = vsyncpa [#allocation7], 0
    %16 = vsyncpa [#allocation10], 0
    %17 = vsyncpa [#allocation5], 0
    %s18 = scalar_lea.sflag [#allocation5], 1
    %19 = vsyncpa %s18, 0
    loop: start=0, step=1, limit=4
    $region2: #{tpu_custom_call.1} parent=1 // loop_pre_header
      _
    $region3: #{tpu_custom_call.1} parent=1 // loop_header
      %s21 = sphi 0, %s25
      %p22 = scmp.ge.s32.totalorder %s21, 4
      %s28 = sphi 0, %s40
      %s29 = sphi 0, %s36
      %s30 = sphi 0, %s28
      %s31 = sphi 0, %s29
      %s32 = sphi 0, %s30
      %s33 = sphi 0, %s31
      %s43 = sphi 0, %s45
      %s46 = sphi 0, %s43
      %s47 = sphi 0, %s46
      %s63 = sphi 0, %s47
      %s67 = sphi 0, %s67
      %s69 = sphi 0, %s67
      %s70 = sphi 0, %s69
      %s84 = sphi 0, %s70
      %s88 = sphi 0, %s88
      %s90 = sphi 0, %s88
      %s91 = sphi 0, %s90
      %s105 = sphi 0, %s91
      %s111 = sphi 0, %s113
      %s114 = sphi 0, %s111
      %s115 = sphi 0, %s114
      %s131 = sphi 0, %s115
      %s137 = sphi 0, %s139
      %s140 = sphi 0, %s137
      %s141 = sphi 0, %s140
      %s157 = sphi 0, %s141
      %s163 = sphi 0, %s165
      %s166 = sphi 0, %s163
      %s167 = sphi 0, %s166
      %s183 = sphi 0, %s167
      %s187 = sphi 0, %s187
      %s189 = sphi 0, %s187
      %s190 = sphi 0, %s189
      %s204 = sphi 0, %s190
      %s210 = sphi 0, %s212
      %s213 = sphi 0, %s210
      %s214 = sphi 0, %s213
      %s230 = sphi 0, %s214
    $region4: #{tpu_custom_call.1} parent=1 // loop_header_branch
      %24 = sbr.rel (%p22) target = $region8
    $region5: #{tpu_custom_call.1} parent=1 // loop_body
      %s26 = ssub.s32 %s21, 1
      %s27 = ssub.s32 %s21, 2
      %s34 = sadd.s32 1, %s29
      %p35 = scmp.ge.s32.totalorder %s34, 1
      %s36 = scalar_select %p35, 0, %s34
      %s37 = sadd.s32 1, %s28
      %s38 = scalar_select %p35, %s37, %s28
      %p39 = scmp.ge.s32.totalorder %s38, 2
      %s40 = scalar_select %p39, 0, %s38
      %s41 = ssub.s32 %s28, %s40
      %p42 = scmp.eq.s32.totalorder %s41, 0
      %s44 = sadd.s32 %s43, 1
      %s45 = scalar_select %p42, %s43, %s44
      %p48 = pneg %p42
      %p49 = scmp.eq.s32.totalorder %s21, 1
      %p50 = por %p48, %p49
      %p51 = scmp.ne.s32.totalorder %s43, %s46
      %p52 = scmp.eq.s32.totalorder %s21, 0
      %p53 = por %p51, %p52
      %p54 = scmp.ne.s32.totalorder %s43, %s46
      %p55 = scmp.eq.s32.totalorder %s26, 1
      %p56 = por %p54, %p55
      %p57 = scmp.ne.s32.totalorder %s46, %s47
      %p58 = scmp.eq.s32.totalorder %s26, 0
      %p59 = por %p57, %p58
      %p60 = scmp.ne.s32.totalorder %s46, %s47
      %p61 = scmp.eq.s32.totalorder %s27, 1
      %p62 = por %p60, %p61
      %p64 = scmp.ne.s32.totalorder %s47, %s63
      %p65 = scmp.eq.s32.totalorder %s27, 0
      %p66 = por %p64, %p65
      %s68 = sadd.s32 %s67, 1
      %p71 = scmp.eq.s32.totalorder %s21, 1
      %p72 = scmp.ne.s32.totalorder %s67, %s69
      %p73 = scmp.eq.s32.totalorder %s21, 0
      %p74 = por %p72, %p73
      %p75 = scmp.ne.s32.totalorder %s67, %s69
      %p76 = scmp.eq.s32.totalorder %s26, 1
      %p77 = por %p75, %p76
      %p78 = scmp.ne.s32.totalorder %s69, %s70
      %p79 = scmp.eq.s32.totalorder %s26, 0
      %p80 = por %p78, %p79
      %p81 = scmp.ne.s32.totalorder %s69, %s70
      %p82 = scmp.eq.s32.totalorder %s27, 1
      %p83 = por %p81, %p82
      %p85 = scmp.ne.s32.totalorder %s70, %s84
      %p86 = scmp.eq.s32.totalorder %s27, 0
      %p87 = por %p85, %p86
      %s89 = sadd.s32 %s88, 1
      %p92 = scmp.eq.s32.totalorder %s21, 1
      %p93 = scmp.ne.s32.totalorder %s88, %s90
      %p94 = scmp.eq.s32.totalorder %s21, 0
      %p95 = por %p93, %p94
      %p96 = scmp.ne.s32.totalorder %s88, %s90
      %p97 = scmp.eq.s32.totalorder %s26, 1
      %p98 = por %p96, %p97
      %p99 = scmp.ne.s32.totalorder %s90, %s91
      %p100 = scmp.eq.s32.totalorder %s26, 0
      %p101 = por %p99, %p100
      %p102 = scmp.ne.s32.totalorder %s90, %s91
      %p103 = scmp.eq.s32.totalorder %s27, 1
      %p104 = por %p102, %p103
      %p106 = scmp.ne.s32.totalorder %s91, %s105
      %p107 = scmp.eq.s32.totalorder %s27, 0
      %p108 = por %p106, %p107
      %s109 = ssub.s32 %s29, %s36
      %p110 = scmp.eq.s32.totalorder %s109, 0
      %s112 = sadd.s32 %s111, 1
      %s113 = scalar_select %p110, %s111, %s112
      %p116 = pneg %p110
      %p117 = scmp.eq.s32.totalorder %s21, 1
      %p118 = por %p116, %p117
      %p119 = scmp.ne.s32.totalorder %s111, %s114
      %p120 = scmp.eq.s32.totalorder %s21, 0
      %p121 = por %p119, %p120
      %p122 = scmp.ne.s32.totalorder %s111, %s114
      %p123 = scmp.eq.s32.totalorder %s26, 1
      %p124 = por %p122, %p123
      %p125 = scmp.ne.s32.totalorder %s114, %s115
      %p126 = scmp.eq.s32.totalorder %s26, 0
      %p127 = por %p125, %p126
      %p128 = scmp.ne.s32.totalorder %s114, %s115
      %p129 = scmp.eq.s32.totalorder %s27, 1
      %p130 = por %p128, %p129
      %p132 = scmp.ne.s32.totalorder %s115, %s131
      %p133 = scmp.eq.s32.totalorder %s27, 0
      %p134 = por %p132, %p133
      %s135 = ssub.s32 %s29, %s36
      %p136 = scmp.eq.s32.totalorder %s135, 0
      %s138 = sadd.s32 %s137, 1
      %s139 = scalar_select %p136, %s137, %s138
      %p142 = pneg %p136
      %p143 = scmp.eq.s32.totalorder %s21, 1
      %p144 = por %p142, %p143
      %p145 = scmp.ne.s32.totalorder %s137, %s140
      %p146 = scmp.eq.s32.totalorder %s21, 0
      %p147 = por %p145, %p146
      %p148 = scmp.ne.s32.totalorder %s137, %s140
      %p149 = scmp.eq.s32.totalorder %s26, 1
      %p150 = por %p148, %p149
      %p151 = scmp.ne.s32.totalorder %s140, %s141
      %p152 = scmp.eq.s32.totalorder %s26, 0
      %p153 = por %p151, %p152
      %p154 = scmp.ne.s32.totalorder %s140, %s141
      %p155 = scmp.eq.s32.totalorder %s27, 1
      %p156 = por %p154, %p155
      %p158 = scmp.ne.s32.totalorder %s141, %s157
      %p159 = scmp.eq.s32.totalorder %s27, 0
      %p160 = por %p158, %p159
      %s161 = ssub.s32 %s29, %s36
      %p162 = scmp.eq.s32.totalorder %s161, 0
      %s164 = sadd.s32 %s163, 1
      %s165 = scalar_select %p162, %s163, %s164
      %p168 = pneg %p162
      %p169 = scmp.eq.s32.totalorder %s21, 1
      %p170 = por %p168, %p169
      %p171 = scmp.ne.s32.totalorder %s163, %s166
      %p172 = scmp.eq.s32.totalorder %s21, 0
      %p173 = por %p171, %p172
      %p174 = scmp.ne.s32.totalorder %s163, %s166
      %p175 = scmp.eq.s32.totalorder %s26, 1
      %p176 = por %p174, %p175
      %p177 = scmp.ne.s32.totalorder %s166, %s167
      %p178 = scmp.eq.s32.totalorder %s26, 0
      %p179 = por %p177, %p178
      %p180 = scmp.ne.s32.totalorder %s166, %s167
      %p181 = scmp.eq.s32.totalorder %s27, 1
      %p182 = por %p180, %p181
      %p184 = scmp.ne.s32.totalorder %s167, %s183
      %p185 = scmp.eq.s32.totalorder %s27, 0
      %p186 = por %p184, %p185
      %s188 = sadd.s32 %s187, 1
      %p191 = scmp.eq.s32.totalorder %s21, 1
      %p192 = scmp.ne.s32.totalorder %s187, %s189
      %p193 = scmp.eq.s32.totalorder %s21, 0
      %p194 = por %p192, %p193
      %p195 = scmp.ne.s32.totalorder %s187, %s189
      %p196 = scmp.eq.s32.totalorder %s26, 1
      %p197 = por %p195, %p196
      %p198 = scmp.ne.s32.totalorder %s189, %s190
      %p199 = scmp.eq.s32.totalorder %s26, 0
      %p200 = por %p198, %p199
      %p201 = scmp.ne.s32.totalorder %s189, %s190
      %p202 = scmp.eq.s32.totalorder %s27, 1
      %p203 = por %p201, %p202
      %p205 = scmp.ne.s32.totalorder %s190, %s204
      %p206 = scmp.eq.s32.totalorder %s27, 0
      %p207 = por %p205, %p206
      %s208 = ssub.s32 %s28, %s40
      %p209 = scmp.eq.s32.totalorder %s208, 0
      %s211 = sadd.s32 %s210, 1
      %s212 = scalar_select %p209, %s210, %s211
      %p215 = pneg %p209
      %p216 = scmp.eq.s32.totalorder %s21, 1
      %p217 = por %p215, %p216
      %p218 = scmp.ne.s32.totalorder %s210, %s213
      %p219 = scmp.eq.s32.totalorder %s21, 0
      %p220 = por %p218, %p219
      %p221 = scmp.ne.s32.totalorder %s210, %s213
      %p222 = scmp.eq.s32.totalorder %s26, 1
      %p223 = por %p221, %p222
      %p224 = scmp.ne.s32.totalorder %s213, %s214
      %p225 = scmp.eq.s32.totalorder %s26, 0
      %p226 = por %p224, %p225
      %p227 = scmp.ne.s32.totalorder %s213, %s214
      %p228 = scmp.eq.s32.totalorder %s27, 1
      %p229 = por %p227, %p228
      %p231 = scmp.ne.s32.totalorder %s214, %s230
      %p232 = scmp.eq.s32.totalorder %s27, 0
      %p233 = por %p231, %p232
      %p234 = scmp.le.s32.totalorder 1, %s21
      %p235 = scmp.lt.s32.totalorder %s21, 3
      %p236 = pnand %p234, %p235
      %p237 = pneg %p236
      // Predicated region
      $region9: #{tpu_custom_call.1} parent=5 // pred_check
        _
      $region10: #{tpu_custom_call.1} parent=5 // pred_check_branch
        %239 = sbr.rel (%p236) target = $region12
      $region11: #{tpu_custom_call.1} parent=5 // pred_region
        %s240 = ssub.s32 %s21, 1
        // Predicated region
        $region13: #{tpu_custom_call.1} parent=11 // pred_check
          %p241 = pneg %p80
        $region14: #{tpu_custom_call.1} parent=11 // pred_check_branch
          %243 = sbr.rel (%p241) target = $region16
        $region15: #{tpu_custom_call.1} parent=11 // pred_region
          %245 = vsyncadd [#allocation7], 0
          %s247 = sshll.u32 %s1, 4
          %s248 = int_to_ptr.hbm [resolvable:$true] %s247
          %s249 = sshll.u32 [#allocation6], 4
          %s250 = int_to_ptr.vmem [resolvable:$true] %s249
          %252 = dma.hbm_to_vmem [thread:$0]  %s248, 32, %s250, [#allocation7]
        $region16: #{tpu_custom_call.1} parent=11 // pred_fallthru
          _
        // Predicated region
        $region17: #{tpu_custom_call.1} parent=11 // pred_check
          %p253 = pneg %p101
        $region18: #{tpu_custom_call.1} parent=11 // pred_check_branch
          %255 = sbr.rel (%p253) target = $region20
        $region19: #{tpu_custom_call.1} parent=11 // pred_region
          %257 = vsyncadd [#allocation7], 0
          %s259 = sshll.u32 %s2, 4
          %s260 = int_to_ptr.hbm [resolvable:$true] %s259
          %s261 = sshll.u32 [#allocation8], 4
          %s262 = int_to_ptr.vmem [resolvable:$true] %s261
          %264 = dma.hbm_to_vmem [thread:$0]  %s260, 32, %s262, [#allocation7]
        $region20: #{tpu_custom_call.1} parent=11 // pred_fallthru
          _
        // Predicated region
        $region21: #{tpu_custom_call.1} parent=11 // pred_check
          %p265 = pneg %p127
        $region22: #{tpu_custom_call.1} parent=11 // pred_check_branch
          %267 = sbr.rel (%p265) target = $region24
        $region23: #{tpu_custom_call.1} parent=11 // pred_region
          %s268 = smul.u32 2, %s31
          %270 = vsyncadd [#allocation10], 0
          %s271 = smul.addr %s268, 4
          %s272 = scalar_lea.hbm %s3, %s271
          %s273 = sshll.u32 %s272, 4
          %s274 = int_to_ptr.hbm [resolvable:$true] %s273
          %s275 = sshll.u32 [#allocation9], 4
          %s276 = int_to_ptr.vmem [resolvable:$true] %s275
          %281 = dma.hbm_to_vmem [thread:$0]  %s274, 4096, %s276, [#allocation10], 128, 128, 8
        $region24: #{tpu_custom_call.1} parent=11 // pred_fallthru
          _
        // Predicated region
        $region25: #{tpu_custom_call.1} parent=11 // pred_check
          %p282 = pneg %p153
        $region26: #{tpu_custom_call.1} parent=11 // pred_check_branch
          %284 = sbr.rel (%p282) target = $region28
        $region27: #{tpu_custom_call.1} parent=11 // pred_region
          %s285 = smul.u32 2, %s31
          %p286 = scmp.lt.s32.totalorder %s285, 1
          %s287 = scalar_select %p286, %s285, 1
          %s288 = scalar_lea.vmem %s4, %s287
          %s289 = smul.u32 2, %s31
        $region28: #{tpu_custom_call.1} parent=11 // pred_fallthru
          _
        // Predicated region
        $region29: #{tpu_custom_call.1} parent=11 // pred_check
          %p290 = pneg %p179
        $region30: #{tpu_custom_call.1} parent=11 // pred_check_branch
          %292 = sbr.rel (%p290) target = $region32
        $region31: #{tpu_custom_call.1} parent=11 // pred_region
          %s293 = smul.u32 32, %s31
          %295 = vsyncadd [#allocation10], 0
          %s296 = smul.addr %s293, 2
          %s297 = smul.addr %s296, 4
          %s298 = scalar_lea.hbm %s5, %s297
          %s299 = sshll.u32 %s298, 4
          %s300 = int_to_ptr.hbm [resolvable:$true] %s299
          %s301 = sshll.u32 [#allocation11], 4
          %s302 = int_to_ptr.vmem [resolvable:$true] %s301
          %307 = dma.hbm_to_vmem [thread:$0]  %s300, 4096, %s302, [#allocation10], 128, 128, 8
        $region32: #{tpu_custom_call.1} parent=11 // pred_fallthru
          _
        // Predicated region
        $region33: #{tpu_custom_call.1} parent=11 // pred_check
          %p308 = pneg %p200
        $region34: #{tpu_custom_call.1} parent=11 // pred_check_branch
          %310 = sbr.rel (%p308) target = $region36
        $region35: #{tpu_custom_call.1} parent=11 // pred_region
          _
        $region36: #{tpu_custom_call.1} parent=11 // pred_fallthru
          _
      $region12: #{tpu_custom_call.1} parent=5 // pred_fallthru
        _
      %p311 = scmp.lt.s32.totalorder %s21, 2
      // Predicated region
      $region37: #{tpu_custom_call.1} parent=5 // pred_check
        %p312 = pneg %p311
      $region38: #{tpu_custom_call.1} parent=5 // pred_check_branch
        %314 = sbr.rel (%p312) target = $region40
      $region39: #{tpu_custom_call.1} parent=5 // pred_region
        // Predicated region
        $region41: #{tpu_custom_call.1} parent=39 // pred_check
          %p315 = pneg %p53
        $region42: #{tpu_custom_call.1} parent=39 // pred_check_branch
          %317 = sbr.rel (%p315) target = $region44
        $region43: #{tpu_custom_call.1} parent=39 // pred_region
          %s318 = sand.u32 %s43, 1
          %s319 = scalar_lea.sflag [#allocation4], %s318
          %s320 = sand.u32 %s43, 1
          %s321 = smul.addr %s320, 16
          %s322 = scalar_lea.vmem [#allocation3], %s321
          %324 = vsyncadd %s319, 0
          %s325 = smul.addr %s28, 2
          %s326 = smul.addr %s325, 8
          %s327 = scalar_lea.hbm %s0, %s326
          %s329 = sshll.u32 %s327, 4
          %s330 = int_to_ptr.hbm [resolvable:$true] %s329
          %s331 = sshll.u32 %s322, 4
          %s332 = int_to_ptr.vmem [resolvable:$true] %s331
          %334 = dma.hbm_to_vmem [thread:$0]  %s330, 256, %s332, %s319
        $region44: #{tpu_custom_call.1} parent=39 // pred_fallthru
          _
      $region40: #{tpu_custom_call.1} parent=5 // pred_fallthru
        _
      %p335 = scmp.le.s32.totalorder 1, %s21
      %p336 = scmp.lt.s32.totalorder %s21, 3
      %p337 = pnand %p335, %p336
      %p338 = pneg %p337
      // Predicated region
      $region45: #{tpu_custom_call.1} parent=5 // pred_check
        _
      $region46: #{tpu_custom_call.1} parent=5 // pred_check_branch
        %340 = sbr.rel (%p337) target = $region48
      $region47: #{tpu_custom_call.1} parent=5 // pred_region
        %s341 = ssub.s32 %s21, 1
        %s342 = sand.u32 %s46, 1
        %s343 = scalar_lea.sflag [#allocation4], %s342
        %s344 = sand.u32 %s46, 1
        %s345 = smul.addr %s344, 16
        %s346 = scalar_lea.vmem [#allocation3], %s345
        // Predicated region
        $region49: #{tpu_custom_call.1} parent=47 // pred_check
          %p347 = pneg %p59
        $region50: #{tpu_custom_call.1} parent=47 // pred_check_branch
          %349 = sbr.rel (%p347) target = $region52
        $region51: #{tpu_custom_call.1} parent=47 // pred_region
          %351 = dma.done %s343, 256
        $region52: #{tpu_custom_call.1} parent=47 // pred_fallthru
          _
        // Predicated region
        $region53: #{tpu_custom_call.1} parent=47 // pred_check
          %p352 = pneg %p80
        $region54: #{tpu_custom_call.1} parent=47 // pred_check_branch
          %354 = sbr.rel (%p352) target = $region56
        $region55: #{tpu_custom_call.1} parent=47 // pred_region
          %356 = dma.done [#allocation7], 32
        $region56: #{tpu_custom_call.1} parent=47 // pred_fallthru
          _
        // Predicated region
        $region57: #{tpu_custom_call.1} parent=47 // pred_check
          %p357 = pneg %p101
        $region58: #{tpu_custom_call.1} parent=47 // pred_check_branch
          %359 = sbr.rel (%p357) target = $region60
        $region59: #{tpu_custom_call.1} parent=47 // pred_region
          %361 = dma.done [#allocation7], 32
        $region60: #{tpu_custom_call.1} parent=47 // pred_fallthru
          _
        // Predicated region
        $region61: #{tpu_custom_call.1} parent=47 // pred_check
          %p362 = pneg %p127
        $region62: #{tpu_custom_call.1} parent=47 // pred_check_branch
          %364 = sbr.rel (%p362) target = $region64
        $region63: #{tpu_custom_call.1} parent=47 // pred_region
          %366 = dma.done [#allocation10], 4096
        $region64: #{tpu_custom_call.1} parent=47 // pred_fallthru
          _
        // Predicated region
        $region65: #{tpu_custom_call.1} parent=47 // pred_check
          %p367 = pneg %p179
        $region66: #{tpu_custom_call.1} parent=47 // pred_check_branch
          %369 = sbr.rel (%p367) target = $region68
        $region67: #{tpu_custom_call.1} parent=47 // pred_region
          %371 = dma.done [#allocation10], 4096
        $region68: #{tpu_custom_call.1} parent=47 // pred_fallthru
          _
        %s372 = sand.u32 %s46, 1
        %s373 = scalar_lea.sflag [#allocation4], %s372
        %s374 = sand.u32 %s46, 1
        %s375 = smul.addr %s374, 16
        %s376 = scalar_lea.vmem [#allocation3], %s375
        %p377 = pneg %p59
        %p378 = pneg %p56
        %p379 = pneg %p80
        %p380 = pneg %p77
        %p381 = pneg %p101
        %p382 = pneg %p98
        %p383 = pneg %p127
        %p384 = pneg %p124
        %s385 = smul.u32 2, %s31
        %p386 = scmp.lt.s32.totalorder %s385, 1
        %s387 = scalar_select %p386, %s385, 1
        %s388 = scalar_lea.vmem %s4, %s387
        %p389 = pneg %p153
        %p390 = pneg %p150
        %p391 = pneg %p179
        %p392 = pneg %p176
        %p393 = pneg %p200
        %p394 = pneg %p197
        %p395 = pneg %p226
        %p396 = pneg %p223
        %s397 = sand.u32 %s213, 1
        %s398 = scalar_lea.sflag [#allocation5], %s397
        %s399 = sand.u32 %s213, 1
        %s400 = smul.addr %s399, 16
        %s401 = scalar_lea.vmem [#allocation12], %s400
        %s402 = smul.u32 2, %s31
        %s403 = smul.u32 2, %s31
        %p404 = scmp.lt.s32.totalorder %s403, 1
        %s405 = scalar_select %p404, %s403, 1
        %s406 = scalar_lea.vmem %s4, %s405
        %s407 = smul.u32 2, %s31
        %s408 = smul.u32 32, %s31
        %p409 = scmp.eq.s32.totalorder %s31, 0
        // Predicated region
        $region69: #{tpu_custom_call.1} parent=47 // pred_check
          %p410 = pneg %p409
        $region70: #{tpu_custom_call.1} parent=47 // pred_check_branch
          %412 = sbr.rel (%p410) target = $region72
        $region71: #{tpu_custom_call.1} parent=47 // pred_region
          %v413 = vld [vmem:[%s346] sm:$0xff]
          %v414 = vld [vmem:[%s346 + $0x8] sm:$0xff]
          %v415 = vadd.f32 %v413, %v414
          %416 = vadd.xlane.f32.xlu0 %v415
          %v417 = vpop.xlane.xlu0 %416
          %v418 = vmul.f32 %v417, 0.00390625
          %v419 = vsub.f32 %v413, %v418
          %v420 = vsub.f32 %v414, %v418
          %v421 = vmul.f32 %v419, %v419
          %v422 = vmul.f32 %v420, %v420
          %v423 = vadd.f32 %v421, %v422
          %424 = vadd.xlane.f32.xlu0 %v423
          %v425 = vpop.xlane.xlu0 %424
          %v426 = vmul.f32 %v425, 0.00390625
          %v427 = vadd.f32 %v426, 1e-05
          %v428 = vrsqrt.pop %v427
          %v429 = vmul.f32 %v428, %v427
          %v430 = vmul.f32 %v429, %v428
          %v431 = vmul.f32 0.5, %v430
          %v432 = vsub.f32 1.5, %v431
          %v433 = vmul.f32 %v428, %v432
          %vm434 = vweird.f32 %v427
          %vm435 = vweird.f32 %v428
          %vm436 = vmor %vm434, %vm435
          %v437 = vsel %vm436, %v428, %v433
          %v438 = vmul.f32 %v419, %v437
          %v439 = vmul.f32 %v420, %v437
          %v440 = vld [vmem:[#allocation6] sm:$0x3]
          %v442 = vperm.slane %v440, 0
          %v443 = vperm.slane %v440, 1
          %v446 = vmul.f32 %v438, %v442
          %v447 = vmul.f32 %v439, %v443
          %v448 = vld [vmem:[#allocation8] sm:$0x3]
          %v450 = vperm.slane %v448, 0
          %v451 = vperm.slane %v448, 1
          %v454 = vadd.f32 %v446, %v450
          %v455 = vadd.f32 %v447, %v451
          %v456 = vpack.c.bf16 %v455, %v454
          %457 = vst [vmem:[#allocation2] sm:$0xff] %v456
          %v458 = vld [vmem:[%s6] sm:$0x3]
          %v460 = vperm.slane %v458, 0
          %v461 = vperm.slane %v458, 1
          %v464 = vadd.f32 %v454, %v460
          %v465 = vadd.f32 %v455, %v461
          %466 = vst [vmem:[%s401] sm:$0xff] %v464
          %467 = vst [vmem:[%s401 + $0x8] sm:$0xff] %v465
        $region72: #{tpu_custom_call.1} parent=47 // pred_fallthru
          _
        %v468 = vld [vmem:[#allocation2] sm:$0xff]
        %v469 = vld [vmem:[#allocation9] sm:$0xff]
        %v470 = vld [vmem:[#allocation9 + $0x8] sm:$0xff]
        %v471 = vld [vmem:[#allocation9 + $0x10] sm:$0xff]
        %v472 = vld [vmem:[#allocation9 + $0x18] sm:$0xff]
        %v473 = vld [vmem:[#allocation9 + $0x20] sm:$0xff]
        %v474 = vld [vmem:[#allocation9 + $0x28] sm:$0xff]
        %v475 = vld [vmem:[#allocation9 + $0x30] sm:$0xff]
        %v476 = vld [vmem:[#allocation9 + $0x38] sm:$0xff]
        %v477 = vld [vmem:[#allocation9 + $0x40] sm:$0xff]
        %v478 = vld [vmem:[#allocation9 + $0x48] sm:$0xff]
        %v479 = vld [vmem:[#allocation9 + $0x50] sm:$0xff]
        %v480 = vld [vmem:[#allocation9 + $0x58] sm:$0xff]
        %v481 = vld [vmem:[#allocation9 + $0x60] sm:$0xff]
        %v482 = vld [vmem:[#allocation9 + $0x68] sm:$0xff]
        %v483 = vld [vmem:[#allocation9 + $0x70] sm:$0xff]
        %v484 = vld [vmem:[#allocation9 + $0x78] sm:$0xff]
        %v485 = vld [vmem:[#allocation9 + $0x80] sm:$0xff]
        %v486 = vld [vmem:[#allocation9 + $0x88] sm:$0xff]
        %v487 = vld [vmem:[#allocation9 + $0x90] sm:$0xff]
        %v488 = vld [vmem:[#allocation9 + $0x98] sm:$0xff]
        %v489 = vld [vmem:[#allocation9 + $0xa0] sm:$0xff]
        %v490 = vld [vmem:[#allocation9 + $0xa8] sm:$0xff]
        %v491 = vld [vmem:[#allocation9 + $0xb0] sm:$0xff]
        %v492 = vld [vmem:[#allocation9 + $0xb8] sm:$0xff]
        %v493 = vld [vmem:[#allocation9 + $0xc0] sm:$0xff]
        %v494 = vld [vmem:[#allocation9 + $0xc8] sm:$0xff]
        %v495 = vld [vmem:[#allocation9 + $0xd0] sm:$0xff]
        %v496 = vld [vmem:[#allocation9 + $0xd8] sm:$0xff]
        %v497 = vld [vmem:[#allocation9 + $0xe0] sm:$0xff]
        %v498 = vld [vmem:[#allocation9 + $0xe8] sm:$0xff]
        %v499 = vld [vmem:[#allocation9 + $0xf0] sm:$0xff]
        %v500 = vld [vmem:[#allocation9 + $0xf8] sm:$0xff]
        %v501 = vld [vmem:[%s406] sm:$0x3]
        %v503 = vperm.slane %v501, 0
        %v504 = vperm.slane %v501, 1
        %v508 = vunpack.c.l.b16 %v468
        %v509 = vunpack.c.h.b16 %v468
        %v510 = vpack.c.b16 %v508, %v508
        %v511 = vpack.c.b16 %v509, %v509
        %v546 = vunpack.c.l.b16 %v469
        %v547 = vunpack.c.h.b16 %v469
        %v548 = vunpack.c.l.b16 %v470
        %v549 = vunpack.c.h.b16 %v470
        %v550 = vunpack.c.l.b16 %v471
        %v551 = vunpack.c.h.b16 %v471
        %v552 = vunpack.c.l.b16 %v472
        %v553 = vunpack.c.h.b16 %v472
        %v554 = vunpack.c.l.b16 %v473
        %v555 = vunpack.c.h.b16 %v473
        %v556 = vunpack.c.l.b16 %v474
        %v557 = vunpack.c.h.b16 %v474
        %v558 = vunpack.c.l.b16 %v475
        %v559 = vunpack.c.h.b16 %v475
        %v560 = vunpack.c.l.b16 %v476
        %v561 = vunpack.c.h.b16 %v476
        %v562 = vunpack.c.l.b16 %v477
        %v563 = vunpack.c.h.b16 %v477
        %v564 = vunpack.c.l.b16 %v478
        %v565 = vunpack.c.h.b16 %v478
        %v566 = vunpack.c.l.b16 %v479
        %v567 = vunpack.c.h.b16 %v479
        %v568 = vunpack.c.l.b16 %v480
        %v569 = vunpack.c.h.b16 %v480
        %v570 = vunpack.c.l.b16 %v481
        %v571 = vunpack.c.h.b16 %v481
        %v572 = vunpack.c.l.b16 %v482
        %v573 = vunpack.c.h.b16 %v482
        %v574 = vunpack.c.l.b16 %v483
        %v575 = vunpack.c.h.b16 %v483
        %v576 = vunpack.c.l.b16 %v484
        %v577 = vunpack.c.h.b16 %v484
        %v578 = vunpack.c.l.b16 %v485
        %v579 = vunpack.c.h.b16 %v485
        %v580 = vunpack.c.l.b16 %v486
        %v581 = vunpack.c.h.b16 %v486
        %v582 = vunpack.c.l.b16 %v487
        %v583 = vunpack.c.h.b16 %v487
        %v584 = vunpack.c.l.b16 %v488
        %v585 = vunpack.c.h.b16 %v488
        %v586 = vunpack.c.l.b16 %v489
        %v587 = vunpack.c.h.b16 %v489
        %v588 = vunpack.c.l.b16 %v490
        %v589 = vunpack.c.h.b16 %v490
        %v590 = vunpack.c.l.b16 %v491
        %v591 = vunpack.c.h.b16 %v491
        %v592 = vunpack.c.l.b16 %v492
        %v593 = vunpack.c.h.b16 %v492
        %v594 = vunpack.c.l.b16 %v493
        %v595 = vunpack.c.h.b16 %v493
        %v596 = vunpack.c.l.b16 %v494
        %v597 = vunpack.c.h.b16 %v494
        %v598 = vunpack.c.l.b16 %v495
        %v599 = vunpack.c.h.b16 %v495
        %v600 = vunpack.c.l.b16 %v496
        %v601 = vunpack.c.h.b16 %v496
        %v602 = vunpack.c.l.b16 %v497
        %v603 = vunpack.c.h.b16 %v497
        %v604 = vunpack.c.l.b16 %v498
        %v605 = vunpack.c.h.b16 %v498
        %v606 = vunpack.c.l.b16 %v499
        %v607 = vunpack.c.h.b16 %v499
        %v608 = vunpack.c.l.b16 %v500
        %v609 = vunpack.c.h.b16 %v500
        %v610 = vpack.c.b16 %v548, %v546
        %v611 = vpack.c.b16 %v549, %v547
        %v612 = vpack.c.b16 %v552, %v550
        %v613 = vpack.c.b16 %v553, %v551
        %v614 = vpack.c.b16 %v556, %v554
        %v615 = vpack.c.b16 %v557, %v555
        %v616 = vpack.c.b16 %v560, %v558
        %v617 = vpack.c.b16 %v561, %v559
        %v618 = vpack.c.b16 %v564, %v562
        %v619 = vpack.c.b16 %v565, %v563
        %v620 = vpack.c.b16 %v568, %v566
        %v621 = vpack.c.b16 %v569, %v567
        %v622 = vpack.c.b16 %v572, %v570
        %v623 = vpack.c.b16 %v573, %v571
        %v624 = vpack.c.b16 %v576, %v574
        %v625 = vpack.c.b16 %v577, %v575
        %v626 = vpack.c.b16 %v580, %v578
        %v627 = vpack.c.b16 %v581, %v579
        %v628 = vpack.c.b16 %v584, %v582
        %v629 = vpack.c.b16 %v585, %v583
        %v630 = vpack.c.b16 %v588, %v586
        %v631 = vpack.c.b16 %v589, %v587
        %v632 = vpack.c.b16 %v592, %v590
        %v633 = vpack.c.b16 %v593, %v591
        %v634 = vpack.c.b16 %v596, %v594
        %v635 = vpack.c.b16 %v597, %v595
        %v636 = vpack.c.b16 %v600, %v598
        %v637 = vpack.c.b16 %v601, %v599
        %v638 = vpack.c.b16 %v604, %v602
        %v639 = vpack.c.b16 %v605, %v603
        %v640 = vpack.c.b16 %v608, %v606
        %v641 = vpack.c.b16 %v609, %v607
        %674 = vmatpush.bf16.msra.mxu0 %v624
        %675 = vmatpush.bf16.msra.mxu0 %v622
        %676 = vmatpush.bf16.msra.mxu0 %v620
        %677 = vmatpush.bf16.msra.mxu0 %v618
        %678 = vmatpush.bf16.msra.mxu0 %v616
        %679 = vmatpush.bf16.msra.mxu0 %v614
        %680 = vmatpush.bf16.msra.mxu0 %v612
        %681 = vmatpush.bf16.msra.mxu0 %v610
        %682 = vmatmul.bf16.gmra.mxu0 %v510
        %v683 = vpop.f32.mrf.mxu0
        %v684 = vadd.f32 %v503, %v683
        %v685 = vpop.f32.mrf.mxu0
        %686 = vdwg.mxu0
        %687 = vmatpush.bf16.msra.mxu0 %v640
        %688 = vmatpush.bf16.msra.mxu0 %v638
        %689 = vmatpush.bf16.msra.mxu0 %v636
        %690 = vmatpush.bf16.msra.mxu0 %v634
        %691 = vmatpush.bf16.msra.mxu0 %v632
        %692 = vmatpush.bf16.msra.mxu0 %v630
        %693 = vmatpush.bf16.msra.mxu0 %v628
        %694 = vmatpush.bf16.msra.mxu0 %v626
        %695 = vmatmul.bf16.gmra.mxu0 %v511
        %v696 = vpop.f32.mrf.mxu0
        %v697 = vadd.f32 %v684, %v696
        %v698 = vpop.f32.mrf.mxu0
        %699 = vdwg.mxu0
        %700 = vmatpush.bf16.msra.mxu0 %v625
        %701 = vmatpush.bf16.msra.mxu0 %v623
        %702 = vmatpush.bf16.msra.mxu0 %v621
        %703 = vmatpush.bf16.msra.mxu0 %v619
        %704 = vmatpush.bf16.msra.mxu0 %v617
        %705 = vmatpush.bf16.msra.mxu0 %v615
        %706 = vmatpush.bf16.msra.mxu0 %v613
        %707 = vmatpush.bf16.msra.mxu0 %v611
        %708 = vmatmul.bf16.gmra.mxu0 %v510
        %v709 = vpop.f32.mrf.mxu0
        %v710 = vadd.f32 %v504, %v709
        %v711 = vpop.f32.mrf.mxu0
        %712 = vdwg.mxu0
        %713 = vmatpush.bf16.msra.mxu0 %v641
        %714 = vmatpush.bf16.msra.mxu0 %v639
        %715 = vmatpush.bf16.msra.mxu0 %v637
        %716 = vmatpush.bf16.msra.mxu0 %v635
        %717 = vmatpush.bf16.msra.mxu0 %v633
        %718 = vmatpush.bf16.msra.mxu0 %v631
        %719 = vmatpush.bf16.msra.mxu0 %v629
        %720 = vmatpush.bf16.msra.mxu0 %v627
        %721 = vmatmul.bf16.gmra.mxu0 %v511
        %v722 = vpop.f32.mrf.mxu0
        %v723 = vadd.f32 %v710, %v722
        %v724 = vpop.f32.mrf.mxu0
        %725 = vdwg.mxu0
        %v726 = vpack.c.bf16 %v723, %v697
        %v727 = vunpack.c.l.bf16 %v726
        %v728 = vunpack.c.h.bf16 %v726
        %v729 = vmul.f32 %v727, %v727
        %v730 = vmul.f32 %v728, %v728
        %v731 = vpack.c.bf16 %v730, %v729
        %v732 = vunpack.c.l.bf16 %v731
        %v733 = vunpack.c.h.bf16 %v731
        %v734 = vmul.f32 %v727, %v732
        %v735 = vmul.f32 %v728, %v733
        %v736 = vpack.c.bf16 %v735, %v734
        %v737 = vunpack.c.l.bf16 %v736
        %v738 = vunpack.c.h.bf16 %v736
        %v739 = vmul.f32 %v737, 0.044677734
        %v740 = vmul.f32 %v738, 0.044677734
        %v741 = vpack.c.bf16 %v740, %v739
        %v742 = vunpack.c.l.bf16 %v741
        %v743 = vunpack.c.h.bf16 %v741
        %v744 = vadd.f32 %v727, %v742
        %v745 = vadd.f32 %v728, %v743
        %v746 = vpack.c.bf16 %v745, %v744
        %v747 = vunpack.c.l.bf16 %v746
        %v748 = vunpack.c.h.bf16 %v746
        %v749 = vmul.f32 %v747, 0.796875
        %v750 = vmul.f32 %v748, 0.796875
        %v751 = vpack.c.bf16 %v750, %v749
        %v752 = vunpack.c.l.bf16 %v751
        %v753 = vunpack.c.h.bf16 %v751
        %v754 = vtanh.pop %v752
        %v755 = vtanh.pop %v753
        %v756 = vpack.c.bf16 %v755, %v754
        %v757 = vunpack.c.l.bf16 %v756
        %v758 = vunpack.c.h.bf16 %v756
        %v759 = vadd.f32 %v757, 1.0
        %v760 = vadd.f32 %v758, 1.0
        %v761 = vpack.c.bf16 %v760, %v759
        %v762 = vunpack.c.l.bf16 %v761
        %v763 = vunpack.c.h.bf16 %v761
        %v764 = vmul.f32 %v762, 0.5
        %v765 = vmul.f32 %v763, 0.5
        %v766 = vpack.c.bf16 %v765, %v764
        %v767 = vunpack.c.l.bf16 %v766
        %v768 = vunpack.c.h.bf16 %v766
        %v769 = vmul.f32 %v727, %v767
        %v770 = vmul.f32 %v728, %v768
        %v771 = vpack.c.bf16 %v769, %v769
        %v772 = vpack.c.bf16 %v770, %v770
        %v773 = vld [vmem:[%s401] sm:$0xff]
        %v774 = vld [vmem:[%s401 + $0x8] sm:$0xff]
        %v775 = vld [vmem:[#allocation11] sm:$0xff]
        %v776 = vld [vmem:[#allocation11 + $0x8] sm:$0xff]
        %v777 = vld [vmem:[#allocation11 + $0x10] sm:$0xff]
        %v778 = vld [vmem:[#allocation11 + $0x18] sm:$0xff]
        %v779 = vld [vmem:[#allocation11 + $0x20] sm:$0xff]
        %v780 = vld [vmem:[#allocation11 + $0x28] sm:$0xff]
        %v781 = vld [vmem:[#allocation11 + $0x30] sm:$0xff]
        %v782 = vld [vmem:[#allocation11 + $0x38] sm:$0xff]
        %v783 = vld [vmem:[#allocation11 + $0x40] sm:$0xff]
        %v784 = vld [vmem:[#allocation11 + $0x48] sm:$0xff]
        %v785 = vld [vmem:[#allocation11 + $0x50] sm:$0xff]
        %v786 = vld [vmem:[#allocation11 + $0x58] sm:$0xff]
        %v787 = vld [vmem:[#allocation11 + $0x60] sm:$0xff]
        %v788 = vld [vmem:[#allocation11 + $0x68] sm:$0xff]
        %v789 = vld [vmem:[#allocation11 + $0x70] sm:$0xff]
        %v790 = vld [vmem:[#allocation11 + $0x78] sm:$0xff]
        %v791 = vld [vmem:[#allocation11 + $0x80] sm:$0xff]
        %v792 = vld [vmem:[#allocation11 + $0x88] sm:$0xff]
        %v793 = vld [vmem:[#allocation11 + $0x90] sm:$0xff]
        %v794 = vld [vmem:[#allocation11 + $0x98] sm:$0xff]
        %v795 = vld [vmem:[#allocation11 + $0xa0] sm:$0xff]
        %v796 = vld [vmem:[#allocation11 + $0xa8] sm:$0xff]
        %v797 = vld [vmem:[#allocation11 + $0xb0] sm:$0xff]
        %v798 = vld [vmem:[#allocation11 + $0xb8] sm:$0xff]
        %v799 = vld [vmem:[#allocation11 + $0xc0] sm:$0xff]
        %v800 = vld [vmem:[#allocation11 + $0xc8] sm:$0xff]
        %v801 = vld [vmem:[#allocation11 + $0xd0] sm:$0xff]
        %v802 = vld [vmem:[#allocation11 + $0xd8] sm:$0xff]
        %v803 = vld [vmem:[#allocation11 + $0xe0] sm:$0xff]
        %v804 = vld [vmem:[#allocation11 + $0xe8] sm:$0xff]
        %v805 = vld [vmem:[#allocation11 + $0xf0] sm:$0xff]
        %v806 = vld [vmem:[#allocation11 + $0xf8] sm:$0xff]
        %v839 = vunpack.c.l.b16 %v775
        %v840 = vunpack.c.h.b16 %v775
        %v841 = vunpack.c.l.b16 %v776
        %v842 = vunpack.c.h.b16 %v776
        %v843 = vunpack.c.l.b16 %v777
        %v844 = vunpack.c.h.b16 %v777
        %v845 = vunpack.c.l.b16 %v778
        %v846 = vunpack.c.h.b16 %v778
        %v847 = vunpack.c.l.b16 %v779
        %v848 = vunpack.c.h.b16 %v779
        %v849 = vunpack.c.l.b16 %v780
        %v850 = vunpack.c.h.b16 %v780
        %v851 = vunpack.c.l.b16 %v781
        %v852 = vunpack.c.h.b16 %v781
        %v853 = vunpack.c.l.b16 %v782
        %v854 = vunpack.c.h.b16 %v782
        %v855 = vunpack.c.l.b16 %v783
        %v856 = vunpack.c.h.b16 %v783
        %v857 = vunpack.c.l.b16 %v784
        %v858 = vunpack.c.h.b16 %v784
        %v859 = vunpack.c.l.b16 %v785
        %v860 = vunpack.c.h.b16 %v785
        %v861 = vunpack.c.l.b16 %v786
        %v862 = vunpack.c.h.b16 %v786
        %v863 = vunpack.c.l.b16 %v787
        %v864 = vunpack.c.h.b16 %v787
        %v865 = vunpack.c.l.b16 %v788
        %v866 = vunpack.c.h.b16 %v788
        %v867 = vunpack.c.l.b16 %v789
        %v868 = vunpack.c.h.b16 %v789
        %v869 = vunpack.c.l.b16 %v790
        %v870 = vunpack.c.h.b16 %v790
        %v871 = vunpack.c.l.b16 %v791
        %v872 = vunpack.c.h.b16 %v791
        %v873 = vunpack.c.l.b16 %v792
        %v874 = vunpack.c.h.b16 %v792
        %v875 = vunpack.c.l.b16 %v793
        %v876 = vunpack.c.h.b16 %v793
        %v877 = vunpack.c.l.b16 %v794
        %v878 = vunpack.c.h.b16 %v794
        %v879 = vunpack.c.l.b16 %v795
        %v880 = vunpack.c.h.b16 %v795
        %v881 = vunpack.c.l.b16 %v796
        %v882 = vunpack.c.h.b16 %v796
        %v883 = vunpack.c.l.b16 %v797
        %v884 = vunpack.c.h.b16 %v797
        %v885 = vunpack.c.l.b16 %v798
        %v886 = vunpack.c.h.b16 %v798
        %v887 = vunpack.c.l.b16 %v799
        %v888 = vunpack.c.h.b16 %v799
        %v889 = vunpack.c.l.b16 %v800
        %v890 = vunpack.c.h.b16 %v800
        %v891 = vunpack.c.l.b16 %v801
        %v892 = vunpack.c.h.b16 %v801
        %v893 = vunpack.c.l.b16 %v802
        %v894 = vunpack.c.h.b16 %v802
        %v895 = vunpack.c.l.b16 %v803
        %v896 = vunpack.c.h.b16 %v803
        %v897 = vunpack.c.l.b16 %v804
        %v898 = vunpack.c.h.b16 %v804
        %v899 = vunpack.c.l.b16 %v805
        %v900 = vunpack.c.h.b16 %v805
        %v901 = vunpack.c.l.b16 %v806
        %v902 = vunpack.c.h.b16 %v806
        %v903 = vpack.c.b16 %v841, %v839
        %v904 = vpack.c.b16 %v842, %v840
        %v905 = vpack.c.b16 %v845, %v843
        %v906 = vpack.c.b16 %v846, %v844
        %v907 = vpack.c.b16 %v849, %v847
        %v908 = vpack.c.b16 %v850, %v848
        %v909 = vpack.c.b16 %v853, %v851
        %v910 = vpack.c.b16 %v854, %v852
        %v911 = vpack.c.b16 %v857, %v855
        %v912 = vpack.c.b16 %v858, %v856
        %v913 = vpack.c.b16 %v861, %v859
        %v914 = vpack.c.b16 %v862, %v860
        %v915 = vpack.c.b16 %v865, %v863
        %v916 = vpack.c.b16 %v866, %v864
        %v917 = vpack.c.b16 %v869, %v867
        %v918 = vpack.c.b16 %v870, %v868
        %v919 = vpack.c.b16 %v873, %v871
        %v920 = vpack.c.b16 %v874, %v872
        %v921 = vpack.c.b16 %v877, %v875
        %v922 = vpack.c.b16 %v878, %v876
        %v923 = vpack.c.b16 %v881, %v879
        %v924 = vpack.c.b16 %v882, %v880
        %v925 = vpack.c.b16 %v885, %v883
        %v926 = vpack.c.b16 %v886, %v884
        %v927 = vpack.c.b16 %v889, %v887
        %v928 = vpack.c.b16 %v890, %v888
        %v929 = vpack.c.b16 %v893, %v891
        %v930 = vpack.c.b16 %v894, %v892
        %v931 = vpack.c.b16 %v897, %v895
        %v932 = vpack.c.b16 %v898, %v896
        %v933 = vpack.c.b16 %v901, %v899
        %v934 = vpack.c.b16 %v902, %v900
        %967 = vmatpush.bf16.msra.mxu0 %v917
        %968 = vmatpush.bf16.msra.mxu0 %v915
        %969 = vmatpush.bf16.msra.mxu0 %v913
        %970 = vmatpush.bf16.msra.mxu0 %v911
        %971 = vmatpush.bf16.msra.mxu0 %v909
        %972 = vmatpush.bf16.msra.mxu0 %v907
        %973 = vmatpush.bf16.msra.mxu0 %v905
        %974 = vmatpush.bf16.msra.mxu0 %v903
        %975 = vmatmul.bf16.gmra.mxu0 %v771
        %v976 = vpop.f32.mrf.mxu0
        %v977 = vadd.f32 0.0, %v976
        %v978 = vpop.f32.mrf.mxu0
        %979 = vdwg.mxu0
        %980 = vmatpush.bf16.msra.mxu0 %v933
        %981 = vmatpush.bf16.msra.mxu0 %v931
        %982 = vmatpush.bf16.msra.mxu0 %v929
        %983 = vmatpush.bf16.msra.mxu0 %v927
        %984 = vmatpush.bf16.msra.mxu0 %v925
        %985 = vmatpush.bf16.msra.mxu0 %v923
        %986 = vmatpush.bf16.msra.mxu0 %v921
        %987 = vmatpush.bf16.msra.mxu0 %v919
        %988 = vmatmul.bf16.gmra.mxu0 %v772
        %v989 = vpop.f32.mrf.mxu0
        %v990 = vadd.f32 %v977, %v989
        %v991 = vpop.f32.mrf.mxu0
        %992 = vdwg.mxu0
        %993 = vmatpush.bf16.msra.mxu0 %v918
        %994 = vmatpush.bf16.msra.mxu0 %v916
        %995 = vmatpush.bf16.msra.mxu0 %v914
        %996 = vmatpush.bf16.msra.mxu0 %v912
        %997 = vmatpush.bf16.msra.mxu0 %v910
        %998 = vmatpush.bf16.msra.mxu0 %v908
        %999 = vmatpush.bf16.msra.mxu0 %v906
        %1000 = vmatpush.bf16.msra.mxu0 %v904
        %1001 = vmatmul.bf16.gmra.mxu0 %v771
        %v1002 = vpop.f32.mrf.mxu0
        %v1003 = vadd.f32 0.0, %v1002
        %v1004 = vpop.f32.mrf.mxu0
        %1005 = vdwg.mxu0
        %1006 = vmatpush.bf16.msra.mxu0 %v934
        %1007 = vmatpush.bf16.msra.mxu0 %v932
        %1008 = vmatpush.bf16.msra.mxu0 %v930
        %1009 = vmatpush.bf16.msra.mxu0 %v928
        %1010 = vmatpush.bf16.msra.mxu0 %v926
        %1011 = vmatpush.bf16.msra.mxu0 %v924
        %1012 = vmatpush.bf16.msra.mxu0 %v922
        %1013 = vmatpush.bf16.msra.mxu0 %v920
        %1014 = vmatmul.bf16.gmra.mxu0 %v772
        %v1015 = vpop.f32.mrf.mxu0
        %v1016 = vadd.f32 %v1003, %v1015
        %v1017 = vpop.f32.mrf.mxu0
        %1018 = vdwg.mxu0
        %v1019 = vadd.f32 %v773, %v990
        %v1020 = vadd.f32 %v774, %v1016
        %1021 = vst [vmem:[%s401] sm:$0xff] %v1019
        %1022 = vst [vmem:[%s401 + $0x8] sm:$0xff] %v1020
        %s1023 = sand.u32 %s213, 1
        %s1024 = scalar_lea.sflag [#allocation5], %s1023
        %s1025 = sand.u32 %s213, 1
        %s1026 = smul.addr %s1025, 16
        %s1027 = scalar_lea.vmem [#allocation12], %s1026
        // Predicated region
        $region73: #{tpu_custom_call.1} parent=47 // pred_check
          %p1028 = pneg %p223
        $region74: #{tpu_custom_call.1} parent=47 // pred_check_branch
          %1030 = sbr.rel (%p1028) target = $region76
        $region75: #{tpu_custom_call.1} parent=47 // pred_region
          %1032 = vsyncadd %s1024, 0
          %s1033 = smul.addr %s30, 2
          %s1034 = smul.addr %s1033, 8
          %s1035 = scalar_lea.hbm %s7, %s1034
          %s1037 = sshll.u32 %s1027, 4
          %s1038 = int_to_ptr.vmem [resolvable:$true] %s1037
          %s1039 = sshll.u32 %s1035, 4
          %s1040 = int_to_ptr.hbm [resolvable:$true] %s1039
          %1042 = dma.vmem_to_hbm [thread:$0]  %s1038, 256, %s1040, %s1024
        $region76: #{tpu_custom_call.1} parent=47 // pred_fallthru
          _
      $region48: #{tpu_custom_call.1} parent=5 // pred_fallthru
        _
      %p1043 = scmp.le.s32.totalorder 2, %s21
      // Predicated region
      $region77: #{tpu_custom_call.1} parent=5 // pred_check
        %p1044 = pneg %p1043
      $region78: #{tpu_custom_call.1} parent=5 // pred_check_branch
        %1046 = sbr.rel (%p1044) target = $region80
      $region79: #{tpu_custom_call.1} parent=5 // pred_region
        %s1047 = ssub.s32 %s21, 2
        // Predicated region
        $region81: #{tpu_custom_call.1} parent=79 // pred_check
          %p1048 = pneg %p229
        $region82: #{tpu_custom_call.1} parent=79 // pred_check_branch
          %1050 = sbr.rel (%p1048) target = $region84
        $region83: #{tpu_custom_call.1} parent=79 // pred_region
          %s1051 = sand.u32 %s214, 1
          %s1052 = scalar_lea.sflag [#allocation5], %s1051
          %s1053 = sand.u32 %s214, 1
          %s1054 = smul.addr %s1053, 16
          %s1055 = scalar_lea.vmem [#allocation12], %s1054
          %1057 = dma.done %s1052, 256
        $region84: #{tpu_custom_call.1} parent=79 // pred_fallthru
          _
      $region80: #{tpu_custom_call.1} parent=5 // pred_fallthru
        _
    $region6: #{tpu_custom_call.1} parent=1 // loop_footer
      %s25 = sadd.s32 1, %s21
    $region7: #{tpu_custom_call.1} parent=1 // loop_footer_branch
      %20 = sbr.rel target = $region3
    $region8: #{tpu_custom_call.1} parent=1 // loop_exit
      _
    %1058 = vsyncpa [#allocation4], 1
    %s1059 = scalar_lea.sflag [#allocation4], 1
    %1060 = vsyncpa %s1059, 1
    %1061 = vsyncpa [#allocation7], 1
    %1062 = vsyncpa [#allocation10], 1
    %1063 = vsyncpa [#allocation5], 1
    %s1064 = scalar_lea.sflag [#allocation5], 1
    %1065 = vsyncpa %s1064, 1

</llo_original>
